<compile_context>
chip_gen: v7x
topology: tpu7x:2x2x1
jax: 0.10.0
libtpu: 0.0.40
codegen_flags: <defaults>
</compile_context>

<pallas_src>
import functools

import jax
import jax.numpy as jnp
import numpy as np
from jax import lax
from jax.experimental import pallas as pl
from jax.experimental.pallas import tpu as pltpu


_MAX_ROW_TILE = 1024                     # rows per grid step (multiple of 8)
_MIN_ROW_TILE = 256                      # only used when rows exceed the cap
_VMEM_LIMIT_CAP = 48 * 1024 * 1024       # stay under v7x's 64 MiB physical
_VMEM_LIMIT_FLOOR = 16 * 1024 * 1024


def _round_up(x: int, m: int) -> int:
    return ((x + m - 1) // m) * m


def _pick_row_tile(n: int, max_tile: int = _MAX_ROW_TILE):
    """Row tile (multiple of 8) and the padded row count it divides.

    If the 8-padded row count fits the cap it becomes a single tile (no extra
    phantom rows).  Otherwise pick the multiple-of-8 tile in
    [_MIN_ROW_TILE, max_tile] that minimizes total padding (ties -> largest
    tile, i.e. fewest grid steps).
    """
    n8 = _round_up(max(n, 1), 8)
    if n8 <= max_tile:
        return n8, n8
    best_tile, best_total = None, None
    for t in range(_MIN_ROW_TILE, max_tile + 1, 8):
        total = _round_up(n8, t)
        if best_total is None or total < best_total or (
                total == best_total and t > best_tile):
            best_tile, best_total = t, total
    return best_tile, best_total


def _mosaic_params(vmem_estimate_bytes: int, dims):
    limit = int(min(_VMEM_LIMIT_CAP,
                    max(_VMEM_LIMIT_FLOOR, 2 * vmem_estimate_bytes)))
    return pltpu.CompilerParams(dimension_semantics=dims,
                                vmem_limit_bytes=limit)


# ---------------------------------------------------------------------------
# Fused K / V projection kernel (one call, two outputs):
#   k = keys   @ Wk_t + bk   (phantom padded rows zeroed at write time)
#   v = values @ Wv_t + bv
# Weight / bias blocks have constant index maps -> fetched once, stay resident.
# ---------------------------------------------------------------------------
def _kv_proj_kernel(kin_ref, vin_ref, wk_ref, bk_ref, wv_ref, bv_ref,
                    ko_ref, vo_ref, *, valid_rows, row_tile):
    # MXU matmuls with f32 accumulation; bias adds kept in f32 (v5e VPU has
    # no bf16 path).
    k = jnp.dot(kin_ref[...], wk_ref[...],
                preferred_element_type=jnp.float32) + bk_ref[...]
    v = jnp.dot(vin_ref[...], wv_ref[...],
                preferred_element_type=jnp.float32) + bv_ref[...]
    if valid_rows is not None:
        # Phantom (padded) key rows would pick up the projection bias; zero
        # them at write time so they contribute nothing to att @ v (exact,
        # since the reference path applies no softmax).
        row = (pl.program_id(0) * row_tile
               + lax.broadcasted_iota(jnp.int32, k.shape, 0))
        k = jnp.where(row < valid_rows, k, 0.0)
    ko_ref[...] = k.astype(ko_ref.dtype)
    vo_ref[...] = v.astype(vo_ref.dtype)


# ---------------------------------------------------------------------------
# Attention core kernel with fused Q projection:
#   q   = x_q @ Wq_t + bq      (1/sqrt(d_q) already folded into Wq_t / bq;
#                               computed once per q tile at kv==0)
#   out = (q @ k^T) @ v        (NO softmax — matches the reference default)
# Grid = (q row tiles [parallel], kv row tiles [arbitrary/reduction]).
# The f32 output block is the accumulator (constant index along kv).
# ---------------------------------------------------------------------------
def _attn_kernel(xq_ref, wq_ref, bq_ref, k_ref, v_ref, o_ref, q_scr):
    kv = pl.program_id(1)

    @pl.when(kv == 0)
    def _():
        q = jnp.dot(xq_ref[...], wq_ref[...],
                    preferred_element_type=jnp.float32) + bq_ref[...]
        q_scr[...] = q.astype(q_scr.dtype)
        o_ref[...] = jnp.zeros_like(o_ref)

    # q @ k^T via a transposed contraction (no XLU transpose of the K tile).
    s = lax.dot_general(q_scr[...], k_ref[...],
                        dimension_numbers=(((1,), (1,)), ((), ())),
                        preferred_element_type=jnp.float32)
    o_ref[...] += jnp.dot(s.astype(v_ref.dtype), v_ref[...],
                          preferred_element_type=jnp.float32)


def init_params(key, d_q, d_v):
    # Matches Attention.init_weights: Linear weights ~ N(0, 0.001), bias = 0.
    # Weights are stored pre-transposed (in, out) so no per-call transpose.
    kq, kk, kv = jax.random.split(key, 3)
    return {
        "wq_t": jax.random.normal(kq, (d_q, d_q), jnp.float32) * 0.001,
        "bq": jnp.zeros((d_q,), jnp.float32),
        "wk_t": jax.random.normal(kk, (d_q, d_q), jnp.float32) * 0.001,
        "bk": jnp.zeros((d_q,), jnp.float32),
        "wv_t": jax.random.normal(kv, (d_v, d_v), jnp.float32) * 0.001,
        "bv": jnp.zeros((d_v,), jnp.float32),
    }


def prepare_params(params, compute_dtype=jnp.bfloat16):
    """One-time weight preparation (hoisted out of the per-call forward):
    pad features to multiples of 128 (lane-dense blocks), fold the
    1/sqrt(d_q) attention scale into Wq/bq, cast weights to compute_dtype
    (MXU inputs).  Biases stay f32 (bias adds run on the VPU in f32)."""
    d_q = params["wq_t"].shape[0]
    d_v = params["wv_t"].shape[0]
    dq_p = _round_up(d_q, 128)
    dv_p = _round_up(d_v, 128)
    scale = 1.0 / float(np.sqrt(d_q))

    def pad2(x, r, c):
        return jnp.pad(x, ((0, r - x.shape[0]), (0, c - x.shape[1])))

    def pad1(x, c):
        return jnp.pad(x, (0, c - x.shape[0])).reshape(1, -1).astype(jnp.float32)

    return {
        "wq_t": pad2(params["wq_t"] * scale, dq_p, dq_p).astype(compute_dtype),
        "wk_t": pad2(params["wk_t"], dq_p, dq_p).astype(compute_dtype),
        "wv_t": pad2(params["wv_t"], dv_p, dv_p).astype(compute_dtype),
        "bq": pad1(params["bq"] * scale, dq_p),
        "bk": pad1(params["bk"], dq_p),
        "bv": pad1(params["bv"], dv_p),
    }


@jax.jit
def attention_forward(queries, keys, values, prepared):
    """queries:(b_s,d_q) keys:(nk,d_q) values:(nk,d_v) -> (b_s,d_v) float32.

    Matches Attention.forward with attention_mask=None,
    attention_weights=None, dropout=0 (no softmax, no dropout).
    Compute dtype is taken from the prepared weights (bf16 by default)."""
    b_s, d_q = queries.shape
    nk = keys.shape[0]
    d_v = values.shape[1]

    wq_t, wk_t, wv_t = prepared["wq_t"], prepared["wk_t"], prepared["wv_t"]
    bq, bk, bv = prepared["bq"], prepared["bk"], prepared["bv"]
    cdt = wq_t.dtype
    cbytes = jnp.dtype(cdt).itemsize
    dq_p = wq_t.shape[0]
    dv_p = wv_t.shape[0]
    assert dq_p >= d_q and dv_p >= d_v, "prepared params don't match inputs"

    # Row geometry: multiples of 8 with minimal padding; features are already
    # padded to multiples of 128 by prepare_params (lane-dense, unmasked
    # stores).
    tq, b_s_p = _pick_row_tile(b_s)
    tkv, nk_p = _pick_row_tile(nk)

    def pad2(x, r, c):
        return jnp.pad(x, ((0, r - x.shape[0]), (0, c - x.shape[1])))

    q_in = pad2(queries, b_s_p, dq_p).astype(cdt)
    k_in = pad2(keys, nk_p, dq_p).astype(cdt)
    v_in = pad2(values, nk_p, dv_p).astype(cdt)

    # ---- fused K / V projection (one call, two outputs) --------------------
    kv_vmem = (2 * tkv * (dq_p + dv_p) * cbytes          # k_in, v_in blocks
               + 2 * tkv * (dq_p + dv_p) * cbytes        # k_out, v_out blocks
               + 2 * (dq_p * dq_p + dv_p * dv_p) * cbytes  # Wk, Wv (constant)
               + 2 * (dq_p + dv_p) * 4)                  # bk, bv
    kv_cost = pl.CostEstimate(
        flops=2 * nk_p * (dq_p * dq_p + dv_p * dv_p),
        transcendentals=0,
        bytes_accessed=cbytes * (2 * nk_p * (dq_p + dv_p)
                                 + dq_p * dq_p + dv_p * dv_p)
        + 4 * (dq_p + dv_p),
    )
    kv_kernel = functools.partial(
        _kv_proj_kernel,
        valid_rows=nk if nk_p > nk else None,
        row_tile=tkv)
    k, v = pl.pallas_call(
        kv_kernel,
        out_shape=(jax.ShapeDtypeStruct((nk_p, dq_p), cdt),
                   jax.ShapeDtypeStruct((nk_p, dv_p), cdt)),
        grid=(nk_p // tkv,),
        in_specs=[
            pl.BlockSpec((tkv, dq_p), lambda i: (i, 0)),
            pl.BlockSpec((tkv, dv_p), lambda i: (i, 0)),
            pl.BlockSpec((dq_p, dq_p), lambda i: (0, 0)),
            pl.BlockSpec((1, dq_p), lambda i: (0, 0)),
            pl.BlockSpec((dv_p, dv_p), lambda i: (0, 0)),
            pl.BlockSpec((1, dv_p), lambda i: (0, 0)),
        ],
        out_specs=(pl.BlockSpec((tkv, dq_p), lambda i: (i, 0)),
                   pl.BlockSpec((tkv, dv_p), lambda i: (i, 0))),
        compiler_params=_mosaic_params(kv_vmem, ("parallel",)),
        cost_estimate=kv_cost,
    )(k_in, v_in, wk_t, bk, wv_t, bv)

    # ---- attention core (fused Q projection) -------------------------------
    # For nk_p <= _MAX_ROW_TILE there is a single kv tile, so the K/V block
    # indices are constant and Pallas keeps them resident (fetched once, not
    # per q tile).  Wq / bq blocks are constant across the whole grid.
    attn_vmem = (2 * tq * dq_p * cbytes                  # x_q blocks
                 + 2 * dq_p * dq_p * cbytes              # Wq (constant)
                 + 2 * dq_p * 4                          # bq
                 + 2 * tkv * (dq_p + dv_p) * cbytes      # k, v blocks
                 + 2 * tq * dv_p * 4                     # o (f32, resident)
                 + tq * dq_p * cbytes                    # q scratch
                 + tq * tkv * (4 + cbytes))              # score tile + cast
    attn_cost = pl.CostEstimate(
        flops=2 * b_s_p * dq_p * dq_p + 2 * b_s_p * nk_p * (dq_p + dv_p),
        transcendentals=0,
        bytes_accessed=cbytes * (b_s_p * dq_p + dq_p * dq_p
                                 + nk_p * (dq_p + dv_p))
        + 4 * (dq_p + b_s_p * dv_p),
    )
    out = pl.pallas_call(
        _attn_kernel,
        out_shape=jax.ShapeDtypeStruct((b_s_p, dv_p), jnp.float32),
        grid=(b_s_p // tq, nk_p // tkv),
        in_specs=[
            pl.BlockSpec((tq, dq_p), lambda i, j: (i, 0)),
            pl.BlockSpec((dq_p, dq_p), lambda i, j: (0, 0)),
            pl.BlockSpec((1, dq_p), lambda i, j: (0, 0)),
            pl.BlockSpec((tkv, dq_p), lambda i, j: (j, 0)),
            pl.BlockSpec((tkv, dv_p), lambda i, j: (j, 0)),
        ],
        out_specs=pl.BlockSpec((tq, dv_p), lambda i, j: (i, 0)),
        scratch_shapes=[pltpu.VMEM((tq, dq_p), cdt)],
        compiler_params=_mosaic_params(attn_vmem, ("parallel", "arbitrary")),
        cost_estimate=attn_cost,
    )(q_in, wq_t, bq, k, v)

    return out[:b_s, :d_v]


def _reference(queries, keys, values, params):
    # float64 numpy reference of the module's default forward path.
    q_in = np.asarray(queries, np.float64)
    k_in = np.asarray(keys, np.float64)
    v_in = np.asarray(values, np.float64)
    d_q = q_in.shape[1]
    q = q_in @ np.asarray(params["wq_t"], np.float64) + np.asarray(params["bq"], np.float64)
    k = k_in @ np.asarray(params["wk_t"], np.float64) + np.asarray(params["bk"], np.float64)
    v = v_in @ np.asarray(params["wv_t"], np.float64) + np.asarray(params["bv"], np.float64)
    att = (q @ k.T) / np.sqrt(d_q)
    return (att @ v).astype(np.float32)


if __name__ == "__main__":
    def run_case(b_s, nk, d_q, d_v, bias_scale=0.0,
                 compute_dtype=jnp.float32, rtol=1e-4, atol=1e-4):
        key = jax.random.PRNGKey(0)
        kp, kq_in, kk_in, kv_in, kb1, kb2, kb3 = jax.random.split(key, 7)
        params = init_params(kp, d_q, d_v)
        if bias_scale:
            # Non-zero biases exercise the fused phantom-key-row masking.
            params["bq"] = jax.random.normal(kb1, (d_q,), jnp.float32) * bias_scale
            params["bk"] = jax.random.normal(kb2, (d_q,), jnp.float32) * bias_scale
            params["bv"] = jax.random.normal(kb3, (d_v,), jnp.float32) * bias_scale
        prepared = prepare_params(params, compute_dtype=compute_dtype)
        queries = jax.random.normal(kq_in, (b_s, d_q), jnp.float32)
        keys = jax.random.normal(kk_in, (nk, d_q), jnp.float32)
        values = jax.random.normal(kv_in, (nk, d_v), jnp.float32)

        out = jax.block_until_ready(
            attention_forward(queries, keys, values, prepared))
        ref = _reference(queries, keys, values, params)
        np.testing.assert_allclose(np.asarray(out), ref, rtol=rtol, atol=atol)

    # f32 correctness at the module's toy configuration.
    run_case(b_s=8, nk=8, d_q=32, d_v=32, compute_dtype=jnp.float32)
    # f32 correctness on a ragged shape: minimal row padding (300 -> 304),
    # non-zero biases (fused phantom-key-row mask) and output slicing.
    run_case(b_s=300, nk=300, d_q=64, d_v=96, bias_scale=0.01,
             compute_dtype=jnp.float32)
    # Default bf16 compute path (native MXU rate on v5e/v6e/v7x) with f32
    # accumulation / f32 bias adds; looser tolerances for the bf16 casts.
    run_case(b_s=300, nk=300, d_q=64, d_v=96, bias_scale=0.01,
             compute_dtype=jnp.bfloat16, rtol=5e-2, atol=1e-4)

    # TODO(synk): attention_mask / attention_weights / dropout>0 (softmax +
    # dropout) branches of the reference forward are not taken by the default
    # call and are not implemented in the kernel.
    print("KERNEL_OK")
</pallas_src>

<mosaic_0001>
module attributes {stable_mosaic.version = 11 : i64} {
  func.func @_attn_kernel(%arg0: i32, %arg1: i32, %arg2: memref<8x128xf32, #tpu.memory_space<vmem>>, %arg3: memref<128x128xf32, #tpu.memory_space<vmem>>, %arg4: memref<1x128xf32, #tpu.memory_space<vmem>>, %arg5: memref<8x128xf32, #tpu.memory_space<vmem>>, %arg6: memref<8x128xf32, #tpu.memory_space<vmem>>, %arg7: memref<8x128xf32, #tpu.memory_space<vmem>>, %arg8: memref<8x128xf32, #tpu.memory_space<vmem>>) attributes {dimension_semantics = [#tpu.dimension_semantics<parallel>, #tpu.dimension_semantics<arbitrary>], iteration_bounds = array<i64: 1, 1>, scalar_prefetch = 0 : i64, scratch_operands = 1 : i64, tpu.core_type = #tpu.core_type<tc>, window_params = [{transform_indices = @transform_0, window_bounds = array<i64: 8, 128>}, {pipeline_mode = #tpu.pipeline_mode<synchronous>, transform_indices = @transform_1, window_bounds = array<i64: 128, 128>}, {pipeline_mode = #tpu.pipeline_mode<synchronous>, transform_indices = @transform_2, window_bounds = array<i64: 1, 128>}, {transform_indices = @transform_3, window_bounds = array<i64: 8, 128>}, {transform_indices = @transform_4, window_bounds = array<i64: 8, 128>}, {transform_indices = @transform_5, window_bounds = array<i64: 8, 128>}]} {
    %c0_i32 = arith.constant 0 : i32
    %0 = arith.cmpi eq, %arg1, %c0_i32 : i32
    %1 = arith.extui %0 : i1 to i32
    %c0_i32_0 = arith.constant 0 : i32
    %2 = arith.cmpi ne, %1, %c0_i32_0 : i32
    scf.if %2 {
      %c0_11 = arith.constant 0 : index
      %c0_12 = arith.constant 0 : index
      %11 = vector.load %arg2[%c0_11, %c0_12] : memref<8x128xf32, #tpu.memory_space<vmem>>, vector<8x128xf32>
      %c0_13 = arith.constant 0 : index
      %c0_14 = arith.constant 0 : index
      %12 = vector.load %arg3[%c0_13, %c0_14] : memref<128x128xf32, #tpu.memory_space<vmem>>, vector<128x128xf32>
      %cst_15 = arith.constant dense<0.000000e+00> : vector<8x128xf32>
      %13 = tpu.matmul %11, %12, %cst_15 {dimension_numbers = #tpu.dot_dimension_numbers<[1], [0], [0], [1], [0, 0, 1, 1], [], []>} : vector<8x128xf32>, vector<128x128xf32>, vector<8x128xf32> -> vector<8x128xf32>
      %c0_16 = arith.constant 0 : index
      %c0_17 = arith.constant 0 : index
      %14 = vector.load %arg4[%c0_16, %c0_17] : memref<1x128xf32, #tpu.memory_space<vmem>>, vector<1x128xf32>
      %15 = vector.broadcast %14 : vector<1x128xf32> to vector<8x128xf32>
      %16 = arith.addf %13, %15 : vector<8x128xf32>
      %c0_18 = arith.constant 0 : index
      %c0_19 = arith.constant 0 : index
      %17 = vector.load %arg8[%c0_18, %c0_19] : memref<8x128xf32, #tpu.memory_space<vmem>>, vector<8x128xf32>
      tpu.vector_store %arg8[%c0_18, %c0_19], %16 {strides = array<i32>} : memref<8x128xf32, #tpu.memory_space<vmem>>, vector<8x128xf32>,
      %cst_20 = arith.constant 0.000000e+00 : f32
      %18 = vector.broadcast %cst_20 : f32 to vector<8x128xf32>
      %c0_21 = arith.constant 0 : index
      %c0_22 = arith.constant 0 : index
      %19 = vector.load %arg7[%c0_21, %c0_22] : memref<8x128xf32, #tpu.memory_space<vmem>>, vector<8x128xf32>
      tpu.vector_store %arg7[%c0_21, %c0_22], %18 {strides = array<i32>} : memref<8x128xf32, #tpu.memory_space<vmem>>, vector<8x128xf32>,
    } else {
    }
    %c0 = arith.constant 0 : index
    %c0_1 = arith.constant 0 : index
    %3 = vector.load %arg8[%c0, %c0_1] : memref<8x128xf32, #tpu.memory_space<vmem>>, vector<8x128xf32>
    %c0_2 = arith.constant 0 : index
    %c0_3 = arith.constant 0 : index
    %4 = vector.load %arg5[%c0_2, %c0_3] : memref<8x128xf32, #tpu.memory_space<vmem>>, vector<8x128xf32>
    %cst = arith.constant dense<0.000000e+00> : vector<8x8xf32>
    %5 = tpu.matmul %3, %4, %cst {dimension_numbers = #tpu.dot_dimension_numbers<[1], [1], [0], [0], [0, 0, 1, 0], [], []>} : vector<8x128xf32>, vector<8x128xf32>, vector<8x8xf32> -> vector<8x8xf32>
    %c0_4 = arith.constant 0 : index
    %c0_5 = arith.constant 0 : index
    %6 = vector.load %arg7[%c0_4, %c0_5] : memref<8x128xf32, #tpu.memory_space<vmem>>, vector<8x128xf32>
    %c0_6 = arith.constant 0 : index
    %c0_7 = arith.constant 0 : index
    %7 = vector.load %arg6[%c0_6, %c0_7] : memref<8x128xf32, #tpu.memory_space<vmem>>, vector<8x128xf32>
    %cst_8 = arith.constant dense<0.000000e+00> : vector<8x128xf32>
    %8 = tpu.matmul %5, %7, %cst_8 {dimension_numbers = #tpu.dot_dimension_numbers<[1], [0], [0], [1], [0, 0, 1, 1], [], []>} : vector<8x8xf32>, vector<8x128xf32>, vector<8x128xf32> -> vector<8x128xf32>
    %9 = arith.addf %6, %8 : vector<8x128xf32>
    %c0_9 = arith.constant 0 : index
    %c0_10 = arith.constant 0 : index
    %10 = vector.load %arg7[%c0_9, %c0_10] : memref<8x128xf32, #tpu.memory_space<vmem>>, vector<8x128xf32>
    tpu.vector_store %arg7[%c0_9, %c0_10], %9 {strides = array<i32>} : memref<8x128xf32, #tpu.memory_space<vmem>>, vector<8x128xf32>,
    return
  }
  func.func @transform_0(%arg0: i32, %arg1: i32) -> (i32, i32) {
    %c0_i32 = arith.constant 0 : i32
    %c0_i32_0 = arith.constant 0 : i32
    return %arg0, %c0_i32 : i32, i32
  }
  func.func @transform_1(%arg0: i32, %arg1: i32) -> (i32, i32) {
    %c0_i32 = arith.constant 0 : i32
    %c0_i32_0 = arith.constant 0 : i32
    %c0_i32_1 = arith.constant 0 : i32
    return %c0_i32, %c0_i32_0 : i32, i32
  }
  func.func @transform_2(%arg0: i32, %arg1: i32) -> (i32, i32) {
    %c0_i32 = arith.constant 0 : i32
    %c0_i32_0 = arith.constant 0 : i32
    %c0_i32_1 = arith.constant 0 : i32
    return %c0_i32, %c0_i32_0 : i32, i32
  }
  func.func @transform_3(%arg0: i32, %arg1: i32) -> (i32, i32) {
    %c0_i32 = arith.constant 0 : i32
    %c0_i32_0 = arith.constant 0 : i32
    return %arg1, %c0_i32 : i32, i32
  }
  func.func @transform_4(%arg0: i32, %arg1: i32) -> (i32, i32) {
    %c0_i32 = arith.constant 0 : i32
    %c0_i32_0 = arith.constant 0 : i32
    return %arg1, %c0_i32 : i32, i32
  }
  func.func @transform_5(%arg0: i32, %arg1: i32) -> (i32, i32) {
    %c0_i32 = arith.constant 0 : i32
    %c0_i32_0 = arith.constant 0 : i32
    return %arg0, %c0_i32 : i32, i32
  }
}

module attributes {stable_mosaic.version = 11 : i64} {
  func.func @_kv_proj_kernel(%arg0: i32, %arg1: memref<8x128xf32, #tpu.memory_space<vmem>>, %arg2: memref<8x128xf32, #tpu.memory_space<vmem>>, %arg3: memref<128x128xf32, #tpu.memory_space<vmem>>, %arg4: memref<1x128xf32, #tpu.memory_space<vmem>>, %arg5: memref<128x128xf32, #tpu.memory_space<vmem>>, %arg6: memref<1x128xf32, #tpu.memory_space<vmem>>, %arg7: memref<8x128xf32, #tpu.memory_space<vmem>>, %arg8: memref<8x128xf32, #tpu.memory_space<vmem>>) attributes {dimension_semantics = [#tpu.dimension_semantics<parallel>], iteration_bounds = array<i64: 1>, scalar_prefetch = 0 : i64, scratch_operands = 0 : i64, tpu.core_type = #tpu.core_type<tc>, window_params = [{transform_indices = @transform_0, window_bounds = array<i64: 8, 128>}, {transform_indices = @transform_1, window_bounds = array<i64: 8, 128>}, {pipeline_mode = #tpu.pipeline_mode<synchronous>, transform_indices = @transform_2, window_bounds = array<i64: 128, 128>}, {pipeline_mode = #tpu.pipeline_mode<synchronous>, transform_indices = @transform_3, window_bounds = array<i64: 1, 128>}, {pipeline_mode = #tpu.pipeline_mode<synchronous>, transform_indices = @transform_4, window_bounds = array<i64: 128, 128>}, {pipeline_mode = #tpu.pipeline_mode<synchronous>, transform_indices = @transform_5, window_bounds = array<i64: 1, 128>}, {transform_indices = @transform_6, window_bounds = array<i64: 8, 128>}, {transform_indices = @transform_7, window_bounds = array<i64: 8, 128>}]} {
    %c0 = arith.constant 0 : index
    %c0_0 = arith.constant 0 : index
    %0 = vector.load %arg1[%c0, %c0_0] : memref<8x128xf32, #tpu.memory_space<vmem>>, vector<8x128xf32>
    %c0_1 = arith.constant 0 : index
    %c0_2 = arith.constant 0 : index
    %1 = vector.load %arg3[%c0_1, %c0_2] : memref<128x128xf32, #tpu.memory_space<vmem>>, vector<128x128xf32>
    %cst = arith.constant dense<0.000000e+00> : vector<8x128xf32>
    %2 = tpu.matmul %0, %1, %cst {dimension_numbers = #tpu.dot_dimension_numbers<[1], [0], [0], [1], [0, 0, 1, 1], [], []>} : vector<8x128xf32>, vector<128x128xf32>, vector<8x128xf32> -> vector<8x128xf32>
    %c0_3 = arith.constant 0 : index
    %c0_4 = arith.constant 0 : index
    %3 = vector.load %arg4[%c0_3, %c0_4] : memref<1x128xf32, #tpu.memory_space<vmem>>, vector<1x128xf32>
    %4 = vector.broadcast %3 : vector<1x128xf32> to vector<8x128xf32>
    %5 = arith.addf %2, %4 : vector<8x128xf32>
    %c0_5 = arith.constant 0 : index
    %c0_6 = arith.constant 0 : index
    %6 = vector.load %arg2[%c0_5, %c0_6] : memref<8x128xf32, #tpu.memory_space<vmem>>, vector<8x128xf32>
    %c0_7 = arith.constant 0 : index
    %c0_8 = arith.constant 0 : index
    %7 = vector.load %arg5[%c0_7, %c0_8] : memref<128x128xf32, #tpu.memory_space<vmem>>, vector<128x128xf32>
    %cst_9 = arith.constant dense<0.000000e+00> : vector<8x128xf32>
    %8 = tpu.matmul %6, %7, %cst_9 {dimension_numbers = #tpu.dot_dimension_numbers<[1], [0], [0], [1], [0, 0, 1, 1], [], []>} : vector<8x128xf32>, vector<128x128xf32>, vector<8x128xf32> -> vector<8x128xf32>
    %c0_10 = arith.constant 0 : index
    %c0_11 = arith.constant 0 : index
    %9 = vector.load %arg6[%c0_10, %c0_11] : memref<1x128xf32, #tpu.memory_space<vmem>>, vector<1x128xf32>
    %10 = vector.broadcast %9 : vector<1x128xf32> to vector<8x128xf32>
    %11 = arith.addf %8, %10 : vector<8x128xf32>
    %c0_12 = arith.constant 0 : index
    %c0_13 = arith.constant 0 : index
    %12 = vector.load %arg7[%c0_12, %c0_13] : memref<8x128xf32, #tpu.memory_space<vmem>>, vector<8x128xf32>
    tpu.vector_store %arg7[%c0_12, %c0_13], %5 {strides = array<i32>} : memref<8x128xf32, #tpu.memory_space<vmem>>, vector<8x128xf32>,
    %c0_14 = arith.constant 0 : index
    %c0_15 = arith.constant 0 : index
    %13 = vector.load %arg8[%c0_14, %c0_15] : memref<8x128xf32, #tpu.memory_space<vmem>>, vector<8x128xf32>
    tpu.vector_store %arg8[%c0_14, %c0_15], %11 {strides = array<i32>} : memref<8x128xf32, #tpu.memory_space<vmem>>, vector<8x128xf32>,
    return
  }
  func.func @transform_0(%arg0: i32) -> (i32, i32) {
    %c0_i32 = arith.constant 0 : i32
    %c0_i32_0 = arith.constant 0 : i32
    return %arg0, %c0_i32 : i32, i32
  }
  func.func @transform_1(%arg0: i32) -> (i32, i32) {
    %c0_i32 = arith.constant 0 : i32
    %c0_i32_0 = arith.constant 0 : i32
    return %arg0, %c0_i32 : i32, i32
  }
  func.func @transform_2(%arg0: i32) -> (i32, i32) {
    %c0_i32 = arith.constant 0 : i32
    %c0_i32_0 = arith.constant 0 : i32
    %c0_i32_1 = arith.constant 0 : i32
    return %c0_i32, %c0_i32_0 : i32, i32
  }
  func.func @transform_3(%arg0: i32) -> (i32, i32) {
    %c0_i32 = arith.constant 0 : i32
    %c0_i32_0 = arith.constant 0 : i32
    %c0_i32_1 = arith.constant 0 : i32
    return %c0_i32, %c0_i32_0 : i32, i32
  }
  func.func @transform_4(%arg0: i32) -> (i32, i32) {
    %c0_i32 = arith.constant 0 : i32
    %c0_i32_0 = arith.constant 0 : i32
    %c0_i32_1 = arith.constant 0 : i32
    return %c0_i32, %c0_i32_0 : i32, i32
  }
  func.func @transform_5(%arg0: i32) -> (i32, i32) {
    %c0_i32 = arith.constant 0 : i32
    %c0_i32_0 = arith.constant 0 : i32
    %c0_i32_1 = arith.constant 0 : i32
    return %c0_i32, %c0_i32_0 : i32, i32
  }
  func.func @transform_6(%arg0: i32) -> (i32, i32) {
    %c0_i32 = arith.constant 0 : i32
    %c0_i32_0 = arith.constant 0 : i32
    return %arg0, %c0_i32 : i32, i32
  }
  func.func @transform_7(%arg0: i32) -> (i32, i32) {
    %c0_i32 = arith.constant 0 : i32
    %c0_i32_0 = arith.constant 0 : i32
    return %arg0, %c0_i32 : i32, i32
  }
}

</mosaic_0001>

<llo_original>
// kernel: attention_forward.2
$region0: #{attention_forward.2}
  #allocation0 [shape = 'u32[]', space=smem, size = 0x4, offset = 0x4, fixed_abs, tag = 'smem constant byte address 0x4 - core index']
  #allocation1 [shape = 'u32[144,128]{1,0:T(1,128)}', space=vmem, size = 0x12000, scoped, tag = 'internal scratch']
  %s0 = inlined_call_operand.vmem [shape: f32[8,128], index: 0, kind: input, shape index: {}]
  %s1 = inlined_call_operand.vmem [shape: f32[8,128], index: 1, kind: input, shape index: {}]
  %s2 = inlined_call_operand.hbm [shape: f32[128,128], index: 2, kind: input, shape index: {}]
  %s3 = inlined_call_operand.vmem [shape: f32[1,128], index: 3, kind: input, shape index: {}]
  %s4 = inlined_call_operand.hbm [shape: f32[128,128], index: 4, kind: input, shape index: {}]
  %s5 = inlined_call_operand.vmem [shape: f32[1,128], index: 5, kind: input, shape index: {}]
  %s6 = inlined_call_operand.vmem [shape: f32[8,128], index: 6, kind: output, shape index: {0}]
  %s7 = inlined_call_operand.vmem [shape: f32[8,128], index: 7, kind: output, shape index: {1}]
  %8 = xla_tuple %s6, %s7
  %s9 = sld [smem:[#allocation0]]
  $region50: #{attention_forward.2} parent=0
    _
  %s11 = ssub.s32 1, %s9
  %s12 = scalar_select 0, %s11, %s9
  $region1: #{attention_forward.2} parent=0
    #allocation2 [shape = 'u8[65536]{0}', space=vmem, size = 0x10000, scoped, tag = 'input window, operand 2, single buffered']
    #allocation3 [shape = 's32[1]{0}', space=sflag, size = 0x4, scoped, tag = 'scoped memory for attention_forward.2']
    #allocation4 [shape = 'u8[65536]{0}', space=vmem, size = 0x10000, scoped, tag = 'input window, operand 4, single buffered']
    #allocation5 [shape = 's32[1]{0}', space=sflag, size = 0x4, scoped, tag = 'scoped memory for attention_forward.2']
    %13 = vsyncpa [#allocation3], 0
    %14 = vsyncpa [#allocation5], 0
    // Predicated region
    $region2: #{attention_forward.2} parent=1 // pred_check
      _
    $region3: #{attention_forward.2} parent=1 // pred_check_branch
      %16 = sbr.rel (0) target = $region5
    $region4: #{attention_forward.2} parent=1 // pred_region
      _
    $region5: #{attention_forward.2} parent=1 // pred_fallthru
      _
    // Predicated region
    $region6: #{attention_forward.2} parent=1 // pred_check
      _
    $region7: #{attention_forward.2} parent=1 // pred_check_branch
      %18 = sbr.rel (0) target = $region9
    $region8: #{attention_forward.2} parent=1 // pred_region
      _
    $region9: #{attention_forward.2} parent=1 // pred_fallthru
      _
    // Predicated region
    $region10: #{attention_forward.2} parent=1 // pred_check
      _
    $region11: #{attention_forward.2} parent=1 // pred_check_branch
      %20 = sbr.rel (0) target = $region13
    $region12: #{attention_forward.2} parent=1 // pred_region
      %s22 = ssub.s32 2048, 2048
      %23 = vsyncadd [#allocation3], %s22
      %s24 = sshll.u32 [#allocation2], 4
      %s25 = int_to_ptr.vmem [resolvable:$true] %s24
      %30 = dma.hbm_to_vmem [thread:$0]  %s2, 2048, %s25, [#allocation3], 128, 128, 8
    $region13: #{attention_forward.2} parent=1 // pred_fallthru
      _
    // Predicated region
    $region14: #{attention_forward.2} parent=1 // pred_check
      _
    $region15: #{attention_forward.2} parent=1 // pred_check_branch
      %32 = sbr.rel (0) target = $region17
    $region16: #{attention_forward.2} parent=1 // pred_region
      _
    $region17: #{attention_forward.2} parent=1 // pred_fallthru
      _
    // Predicated region
    $region18: #{attention_forward.2} parent=1 // pred_check
      _
    $region19: #{attention_forward.2} parent=1 // pred_check_branch
      %34 = sbr.rel (0) target = $region21
    $region20: #{attention_forward.2} parent=1 // pred_region
      %s36 = ssub.s32 2048, 2048
      %37 = vsyncadd [#allocation5], %s36
      %s38 = sshll.u32 [#allocation4], 4
      %s39 = int_to_ptr.vmem [resolvable:$true] %s38
      %44 = dma.hbm_to_vmem [thread:$0]  %s4, 2048, %s39, [#allocation5], 128, 128, 8
    $region21: #{attention_forward.2} parent=1 // pred_fallthru
      _
    // Predicated region
    $region22: #{attention_forward.2} parent=1 // pred_check
      _
    $region23: #{attention_forward.2} parent=1 // pred_check_branch
      %46 = sbr.rel (0) target = $region25
    $region24: #{attention_forward.2} parent=1 // pred_region
      _
    $region25: #{attention_forward.2} parent=1 // pred_fallthru
      _
    // Predicated region
    $region26: #{attention_forward.2} parent=1 // pred_check
      _
    $region27: #{attention_forward.2} parent=1 // pred_check_branch
      %48 = sbr.rel (0) target = $region29
    $region28: #{attention_forward.2} parent=1 // pred_region
      %49 = dma.done [#allocation3], 2048
    $region29: #{attention_forward.2} parent=1 // pred_fallthru
      _
    // Predicated region
    $region30: #{attention_forward.2} parent=1 // pred_check
      _
    $region31: #{attention_forward.2} parent=1 // pred_check_branch
      %51 = sbr.rel (0) target = $region33
    $region32: #{attention_forward.2} parent=1 // pred_region
      %52 = dma.done [#allocation5], 2048
    $region33: #{attention_forward.2} parent=1 // pred_fallthru
      _
    %v53 = vld [vmem:[%s0] sm:$0xff]
    %v54 = vld [vmem:[#allocation2] sm:$0xff]
    %v55 = vld [vmem:[#allocation2 + $0x8] sm:$0xff]
    %v56 = vld [vmem:[#allocation2 + $0x10] sm:$0xff]
    %v57 = vld [vmem:[#allocation2 + $0x18] sm:$0xff]
    %v58 = vld [vmem:[#allocation2 + $0x20] sm:$0xff]
    %v59 = vld [vmem:[#allocation2 + $0x28] sm:$0xff]
    %v60 = vld [vmem:[#allocation2 + $0x30] sm:$0xff]
    %v61 = vld [vmem:[#allocation2 + $0x38] sm:$0xff]
    %v62 = vld [vmem:[#allocation2 + $0x40] sm:$0xff]
    %v63 = vld [vmem:[#allocation2 + $0x48] sm:$0xff]
    %v64 = vld [vmem:[#allocation2 + $0x50] sm:$0xff]
    %v65 = vld [vmem:[#allocation2 + $0x58] sm:$0xff]
    %v66 = vld [vmem:[#allocation2 + $0x60] sm:$0xff]
    %v67 = vld [vmem:[#allocation2 + $0x68] sm:$0xff]
    %v68 = vld [vmem:[#allocation2 + $0x70] sm:$0xff]
    %v69 = vld [vmem:[#allocation2 + $0x78] sm:$0xff]
    %v70 = vld [vmem:[%s3] sm:$0x1]
    %v72 = vlaneseq
    %v73 = vshrl.u32 %v72, 7
    %v74 = vsub.s32 0, %v73
    %v75 = vrot.slane %v70, %v74
    %77 = vmatprep.subr.mxu0 0.0
    %78 = vmatpush1.msra.mxu0 %v54
    %79 = vmatprep.subr.mxu0 0.0
    %80 = vmatpush1.msra.mxu0 %v55
    %81 = vmatprep.subr.mxu0 0.0
    %82 = vmatpush1.msra.mxu0 %v56
    %83 = vmatprep.subr.mxu0 0.0
    %84 = vmatpush1.msra.mxu0 %v57
    %85 = vmatprep.subr.mxu0 0.0
    %86 = vmatpush1.msra.mxu0 %v58
    %87 = vmatprep.subr.mxu0 0.0
    %88 = vmatpush1.msra.mxu0 %v59
    %89 = vmatprep.subr.mxu0 0.0
    %90 = vmatpush1.msra.mxu0 %v60
    %91 = vmatprep.subr.mxu0 0.0
    %92 = vmatpush1.msra.mxu0 %v61
    %93 = vmatprep.subr.mxu0 0.0
    %94 = vmatpush1.msra.mxu0 %v62
    %95 = vmatprep.subr.mxu0 0.0
    %96 = vmatpush1.msra.mxu0 %v63
    %97 = vmatprep.subr.mxu0 0.0
    %98 = vmatpush1.msra.mxu0 %v64
    %99 = vmatprep.subr.mxu0 0.0
    %100 = vmatpush1.msra.mxu0 %v65
    %101 = vmatprep.subr.mxu0 0.0
    %102 = vmatpush1.msra.mxu0 %v66
    %103 = vmatprep.subr.mxu0 0.0
    %104 = vmatpush1.msra.mxu0 %v67
    %105 = vmatprep.subr.mxu0 0.0
    %106 = vmatpush1.msra.mxu0 %v68
    %107 = vmatprep.subr.mxu0 0.0
    %108 = vmatpush1.msra.mxu0 %v69
    %109 = vmatprep.subr.mxu0 0.0
    %110 = vmatpush1.msra.mxu0 0.0
    %111 = vmatprep.subr.mxu0 0.0
    %112 = vmatpush1.msra.mxu0 0.0
    %113 = vmatprep.subr.mxu0 0.0
    %114 = vmatpush1.msra.mxu0 0.0
    %115 = vmatprep.subr.mxu0 0.0
    %116 = vmatpush1.msra.mxu0 0.0
    %117 = vmatprep.subr.mxu0 0.0
    %118 = vmatpush1.msra.mxu0 0.0
    %119 = vmatprep.subr.mxu0 0.0
    %120 = vmatpush1.msra.mxu0 0.0
    %121 = vmatprep.subr.mxu0 0.0
    %122 = vmatpush1.msra.mxu0 0.0
    %123 = vmatprep.subr.mxu0 0.0
    %124 = vmatpush1.msra.mxu0 0.0
    %125 = vmatprep.subr.mxu0 0.0
    %126 = vmatpush1.msra.mxu0 0.0
    %127 = vmatprep.subr.mxu0 0.0
    %128 = vmatpush1.msra.mxu0 0.0
    %129 = vmatprep.subr.mxu0 0.0
    %130 = vmatpush1.msra.mxu0 0.0
    %131 = vmatprep.subr.mxu0 0.0
    %132 = vmatpush1.msra.mxu0 0.0
    %133 = vmatprep.subr.mxu0 0.0
    %134 = vmatpush1.msra.mxu0 0.0
    %135 = vmatprep.subr.mxu0 0.0
    %136 = vmatpush1.msra.mxu0 0.0
    %137 = vmatprep.subr.mxu0 0.0
    %138 = vmatpush1.msra.mxu0 0.0
    %139 = vmatprep.subr.mxu0 0.0
    %140 = vmatpush1.msra.mxu0 0.0
    %141 = vmatprep.mubr.f32.mxu0 0.0
    %142 = vmatmul.mubr.f32.gmra.mrb[0].mxu0 %v53
    %v143 = vpop.f32.mrb[0].mxu0
    %v144 = vadd.f32 %v75, %v143
    %v145 = vpop.f32.mrb[0].mxu0
    %146 = vdwg.mxu0
    %v147 = vld [vmem:[%s1] sm:$0xff]
    %v148 = vld [vmem:[#allocation4] sm:$0xff]
    %v149 = vld [vmem:[#allocation4 + $0x8] sm:$0xff]
    %v150 = vld [vmem:[#allocation4 + $0x10] sm:$0xff]
    %v151 = vld [vmem:[#allocation4 + $0x18] sm:$0xff]
    %v152 = vld [vmem:[#allocation4 + $0x20] sm:$0xff]
    %v153 = vld [vmem:[#allocation4 + $0x28] sm:$0xff]
    %v154 = vld [vmem:[#allocation4 + $0x30] sm:$0xff]
    %v155 = vld [vmem:[#allocation4 + $0x38] sm:$0xff]
    %v156 = vld [vmem:[#allocation4 + $0x40] sm:$0xff]
    %v157 = vld [vmem:[#allocation4 + $0x48] sm:$0xff]
    %v158 = vld [vmem:[#allocation4 + $0x50] sm:$0xff]
    %v159 = vld [vmem:[#allocation4 + $0x58] sm:$0xff]
    %v160 = vld [vmem:[#allocation4 + $0x60] sm:$0xff]
    %v161 = vld [vmem:[#allocation4 + $0x68] sm:$0xff]
    %v162 = vld [vmem:[#allocation4 + $0x70] sm:$0xff]
    %v163 = vld [vmem:[#allocation4 + $0x78] sm:$0xff]
    %v164 = vld [vmem:[%s5] sm:$0x1]
    %v166 = vlaneseq
    %v167 = vshrl.u32 %v166, 7
    %v168 = vsub.s32 0, %v167
    %v169 = vrot.slane %v164, %v168
    %171 = vmatprep.subr.mxu0 0.0
    %172 = vmatpush1.msra.mxu0 %v148
    %173 = vmatprep.subr.mxu0 0.0
    %174 = vmatpush1.msra.mxu0 %v149
    %175 = vmatprep.subr.mxu0 0.0
    %176 = vmatpush1.msra.mxu0 %v150
    %177 = vmatprep.subr.mxu0 0.0
    %178 = vmatpush1.msra.mxu0 %v151
    %179 = vmatprep.subr.mxu0 0.0
    %180 = vmatpush1.msra.mxu0 %v152
    %181 = vmatprep.subr.mxu0 0.0
    %182 = vmatpush1.msra.mxu0 %v153
    %183 = vmatprep.subr.mxu0 0.0
    %184 = vmatpush1.msra.mxu0 %v154
    %185 = vmatprep.subr.mxu0 0.0
    %186 = vmatpush1.msra.mxu0 %v155
    %187 = vmatprep.subr.mxu0 0.0
    %188 = vmatpush1.msra.mxu0 %v156
    %189 = vmatprep.subr.mxu0 0.0
    %190 = vmatpush1.msra.mxu0 %v157
    %191 = vmatprep.subr.mxu0 0.0
    %192 = vmatpush1.msra.mxu0 %v158
    %193 = vmatprep.subr.mxu0 0.0
    %194 = vmatpush1.msra.mxu0 %v159
    %195 = vmatprep.subr.mxu0 0.0
    %196 = vmatpush1.msra.mxu0 %v160
    %197 = vmatprep.subr.mxu0 0.0
    %198 = vmatpush1.msra.mxu0 %v161
    %199 = vmatprep.subr.mxu0 0.0
    %200 = vmatpush1.msra.mxu0 %v162
    %201 = vmatprep.subr.mxu0 0.0
    %202 = vmatpush1.msra.mxu0 %v163
    %203 = vmatprep.subr.mxu0 0.0
    %204 = vmatpush1.msra.mxu0 0.0
    %205 = vmatprep.subr.mxu0 0.0
    %206 = vmatpush1.msra.mxu0 0.0
    %207 = vmatprep.subr.mxu0 0.0
    %208 = vmatpush1.msra.mxu0 0.0
    %209 = vmatprep.subr.mxu0 0.0
    %210 = vmatpush1.msra.mxu0 0.0
    %211 = vmatprep.subr.mxu0 0.0
    %212 = vmatpush1.msra.mxu0 0.0
    %213 = vmatprep.subr.mxu0 0.0
    %214 = vmatpush1.msra.mxu0 0.0
    %215 = vmatprep.subr.mxu0 0.0
    %216 = vmatpush1.msra.mxu0 0.0
    %217 = vmatprep.subr.mxu0 0.0
    %218 = vmatpush1.msra.mxu0 0.0
    %219 = vmatprep.subr.mxu0 0.0
    %220 = vmatpush1.msra.mxu0 0.0
    %221 = vmatprep.subr.mxu0 0.0
    %222 = vmatpush1.msra.mxu0 0.0
    %223 = vmatprep.subr.mxu0 0.0
    %224 = vmatpush1.msra.mxu0 0.0
    %225 = vmatprep.subr.mxu0 0.0
    %226 = vmatpush1.msra.mxu0 0.0
    %227 = vmatprep.subr.mxu0 0.0
    %228 = vmatpush1.msra.mxu0 0.0
    %229 = vmatprep.subr.mxu0 0.0
    %230 = vmatpush1.msra.mxu0 0.0
    %231 = vmatprep.subr.mxu0 0.0
    %232 = vmatpush1.msra.mxu0 0.0
    %233 = vmatprep.subr.mxu0 0.0
    %234 = vmatpush1.msra.mxu0 0.0
    %235 = vmatprep.mubr.f32.mxu0 0.0
    %236 = vmatmul.mubr.f32.gmra.mrb[0].mxu0 %v147
    %v237 = vpop.f32.mrb[0].mxu0
    %v238 = vadd.f32 %v169, %v237
    %v239 = vpop.f32.mrb[0].mxu0
    %240 = vdwg.mxu0
    %241 = vst [vmem:[%s6] sm:$0xff] %v144
    %242 = vst [vmem:[%s7] sm:$0xff] %v238
    // Predicated region
    $region34: #{attention_forward.2} parent=1 // pred_check
      _
    $region35: #{attention_forward.2} parent=1 // pred_check_branch
      %244 = sbr.rel (0) target = $region37
    $region36: #{attention_forward.2} parent=1 // pred_region
      _
    $region37: #{attention_forward.2} parent=1 // pred_fallthru
      _
    // Predicated region
    $region38: #{attention_forward.2} parent=1 // pred_check
      _
    $region39: #{attention_forward.2} parent=1 // pred_check_branch
      %246 = sbr.rel (0) target = $region41
    $region40: #{attention_forward.2} parent=1 // pred_region
      _
    $region41: #{attention_forward.2} parent=1 // pred_fallthru
      _
    // Predicated region
    $region42: #{attention_forward.2} parent=1 // pred_check
      _
    $region43: #{attention_forward.2} parent=1 // pred_check_branch
      %248 = sbr.rel (0) target = $region45
    $region44: #{attention_forward.2} parent=1 // pred_region
      _
    $region45: #{attention_forward.2} parent=1 // pred_fallthru
      _
    // Predicated region
    $region46: #{attention_forward.2} parent=1 // pred_check
      _
    $region47: #{attention_forward.2} parent=1 // pred_check_branch
      %250 = sbr.rel (0) target = $region49
    $region48: #{attention_forward.2} parent=1 // pred_region
      _
    $region49: #{attention_forward.2} parent=1 // pred_fallthru
      _
    %251 = vsyncpa [#allocation3], 1
    %252 = vsyncpa [#allocation5], 1

// kernel: attention_forward.3
$region0: #{attention_forward.3}
  #allocation0 [shape = 'u32[]', space=smem, size = 0x4, offset = 0x4, fixed_abs, tag = 'smem constant byte address 0x4 - core index']
  #allocation1 [shape = 'u32[144,128]{1,0:T(1,128)}', space=vmem, size = 0x12000, scoped, tag = 'internal scratch']
  #allocation2 [shape = 'f32[8,128]{1,0:T(8,128)}', space=vmem, size = 0x1000, scoped, tag = 'scratch operand']
  %s0 = inlined_call_operand.vmem [shape: f32[8,128], index: 0, kind: input, shape index: {}]
  %s1 = inlined_call_operand.vmem [shape: f32[128,128], index: 1, kind: input, shape index: {}]
  %s2 = inlined_call_operand.vmem [shape: f32[1,128], index: 2, kind: input, shape index: {}]
  %s3 = inlined_call_operand.vmem [shape: f32[8,128], index: 3, kind: input, shape index: {}]
  %s4 = inlined_call_operand.vmem [shape: f32[8,128], index: 4, kind: input, shape index: {}]
  %s5 = inlined_call_operand.hbm [shape: f32[8,128], index: 5, kind: output, shape index: {}]
  %s6 = sld [smem:[#allocation0]]
  $region34: #{attention_forward.3} parent=0
    _
  %s8 = ssub.s32 1, %s6
  %s9 = scalar_select 0, %s8, %s6
  $region1: #{attention_forward.3} parent=0
    #allocation3 [shape = 'u8[4096]{0}', space=vmem, size = 0x1000, scoped, tag = 'output window, operand 0, single buffered']
    #allocation4 [shape = 's32[1]{0}', space=sflag, size = 0x4, scoped, tag = 'scoped memory for attention_forward.3']
    %10 = vsyncpa [#allocation4], 0
    // Predicated region
    $region2: #{attention_forward.3} parent=1 // pred_check
      _
    $region3: #{attention_forward.3} parent=1 // pred_check_branch
      %12 = sbr.rel (0) target = $region5
    $region4: #{attention_forward.3} parent=1 // pred_region
      _
    $region5: #{attention_forward.3} parent=1 // pred_fallthru
      _
    // Predicated region
    $region6: #{attention_forward.3} parent=1 // pred_check
      _
    $region7: #{attention_forward.3} parent=1 // pred_check_branch
      %14 = sbr.rel (0) target = $region9
    $region8: #{attention_forward.3} parent=1 // pred_region
      _
    $region9: #{attention_forward.3} parent=1 // pred_fallthru
      _
    // Predicated region
    $region10: #{attention_forward.3} parent=1 // pred_check
      _
    $region11: #{attention_forward.3} parent=1 // pred_check_branch
      %16 = sbr.rel (0) target = $region13
    $region12: #{attention_forward.3} parent=1 // pred_region
      _
    $region13: #{attention_forward.3} parent=1 // pred_fallthru
      _
    // Predicated region
    $region14: #{attention_forward.3} parent=1 // pred_check
      _
    $region15: #{attention_forward.3} parent=1 // pred_check_branch
      %18 = sbr.rel (0) target = $region17
    $region16: #{attention_forward.3} parent=1 // pred_region
      _
    $region17: #{attention_forward.3} parent=1 // pred_fallthru
      _
    // Predicated region
    $region18: #{attention_forward.3} parent=1 // pred_check
      _
    $region19: #{attention_forward.3} parent=1 // pred_check_branch
      %20 = sbr.rel (0) target = $region21
    $region20: #{attention_forward.3} parent=1 // pred_region
      _
    $region21: #{attention_forward.3} parent=1 // pred_fallthru
      _
    %p21 = scmp.eq.s32.totalorder 0, 0
    // Predicated region
    $region22: #{attention_forward.3} parent=1 // pred_check
      %p22 = pneg %p21
    $region23: #{attention_forward.3} parent=1 // pred_check_branch
      %24 = sbr.rel (%p22) target = $region25
    $region24: #{attention_forward.3} parent=1 // pred_region
      %v25 = vld [vmem:[%s0] sm:$0xff]
      %v26 = vld [vmem:[%s1] sm:$0xff]
      %v27 = vld [vmem:[%s1 + $0x8] sm:$0xff]
      %v28 = vld [vmem:[%s1 + $0x10] sm:$0xff]
      %v29 = vld [vmem:[%s1 + $0x18] sm:$0xff]
      %v30 = vld [vmem:[%s1 + $0x20] sm:$0xff]
      %v31 = vld [vmem:[%s1 + $0x28] sm:$0xff]
      %v32 = vld [vmem:[%s1 + $0x30] sm:$0xff]
      %v33 = vld [vmem:[%s1 + $0x38] sm:$0xff]
      %v34 = vld [vmem:[%s1 + $0x40] sm:$0xff]
      %v35 = vld [vmem:[%s1 + $0x48] sm:$0xff]
      %v36 = vld [vmem:[%s1 + $0x50] sm:$0xff]
      %v37 = vld [vmem:[%s1 + $0x58] sm:$0xff]
      %v38 = vld [vmem:[%s1 + $0x60] sm:$0xff]
      %v39 = vld [vmem:[%s1 + $0x68] sm:$0xff]
      %v40 = vld [vmem:[%s1 + $0x70] sm:$0xff]
      %v41 = vld [vmem:[%s1 + $0x78] sm:$0xff]
      %v42 = vld [vmem:[%s2] sm:$0x1]
      %v44 = vlaneseq
      %v45 = vshrl.u32 %v44, 7
      %v46 = vsub.s32 0, %v45
      %v47 = vrot.slane %v42, %v46
      %49 = vmatprep.subr.mxu0 0.0
      %50 = vmatpush1.msra.mxu0 %v26
      %51 = vmatprep.subr.mxu0 0.0
      %52 = vmatpush1.msra.mxu0 %v27
      %53 = vmatprep.subr.mxu0 0.0
      %54 = vmatpush1.msra.mxu0 %v28
      %55 = vmatprep.subr.mxu0 0.0
      %56 = vmatpush1.msra.mxu0 %v29
      %57 = vmatprep.subr.mxu0 0.0
      %58 = vmatpush1.msra.mxu0 %v30
      %59 = vmatprep.subr.mxu0 0.0
      %60 = vmatpush1.msra.mxu0 %v31
      %61 = vmatprep.subr.mxu0 0.0
      %62 = vmatpush1.msra.mxu0 %v32
      %63 = vmatprep.subr.mxu0 0.0
      %64 = vmatpush1.msra.mxu0 %v33
      %65 = vmatprep.subr.mxu0 0.0
      %66 = vmatpush1.msra.mxu0 %v34
      %67 = vmatprep.subr.mxu0 0.0
      %68 = vmatpush1.msra.mxu0 %v35
      %69 = vmatprep.subr.mxu0 0.0
      %70 = vmatpush1.msra.mxu0 %v36
      %71 = vmatprep.subr.mxu0 0.0
      %72 = vmatpush1.msra.mxu0 %v37
      %73 = vmatprep.subr.mxu0 0.0
      %74 = vmatpush1.msra.mxu0 %v38
      %75 = vmatprep.subr.mxu0 0.0
      %76 = vmatpush1.msra.mxu0 %v39
      %77 = vmatprep.subr.mxu0 0.0
      %78 = vmatpush1.msra.mxu0 %v40
      %79 = vmatprep.subr.mxu0 0.0
      %80 = vmatpush1.msra.mxu0 %v41
      %81 = vmatprep.subr.mxu0 0.0
      %82 = vmatpush1.msra.mxu0 0.0
      %83 = vmatprep.subr.mxu0 0.0
      %84 = vmatpush1.msra.mxu0 0.0
      %85 = vmatprep.subr.mxu0 0.0
      %86 = vmatpush1.msra.mxu0 0.0
      %87 = vmatprep.subr.mxu0 0.0
      %88 = vmatpush1.msra.mxu0 0.0
      %89 = vmatprep.subr.mxu0 0.0
      %90 = vmatpush1.msra.mxu0 0.0
      %91 = vmatprep.subr.mxu0 0.0
      %92 = vmatpush1.msra.mxu0 0.0
      %93 = vmatprep.subr.mxu0 0.0
      %94 = vmatpush1.msra.mxu0 0.0
      %95 = vmatprep.subr.mxu0 0.0
      %96 = vmatpush1.msra.mxu0 0.0
      %97 = vmatprep.subr.mxu0 0.0
      %98 = vmatpush1.msra.mxu0 0.0
      %99 = vmatprep.subr.mxu0 0.0
      %100 = vmatpush1.msra.mxu0 0.0
      %101 = vmatprep.subr.mxu0 0.0
      %102 = vmatpush1.msra.mxu0 0.0
      %103 = vmatprep.subr.mxu0 0.0
      %104 = vmatpush1.msra.mxu0 0.0
      %105 = vmatprep.subr.mxu0 0.0
      %106 = vmatpush1.msra.mxu0 0.0
      %107 = vmatprep.subr.mxu0 0.0
      %108 = vmatpush1.msra.mxu0 0.0
      %109 = vmatprep.subr.mxu0 0.0
      %110 = vmatpush1.msra.mxu0 0.0
      %111 = vmatprep.subr.mxu0 0.0
      %112 = vmatpush1.msra.mxu0 0.0
      %113 = vmatprep.mubr.f32.mxu0 0.0
      %114 = vmatmul.mubr.f32.gmra.mrb[0].mxu0 %v25
      %v115 = vpop.f32.mrb[0].mxu0
      %v116 = vadd.f32 %v47, %v115
      %v117 = vpop.f32.mrb[0].mxu0
      %118 = vdwg.mxu0
      %119 = vst [vmem:[#allocation2] sm:$0xff] %v116
      %120 = vst [vmem:[#allocation3] sm:$0xff] 0.0
    $region25: #{attention_forward.3} parent=1 // pred_fallthru
      _
    %v121 = vld [vmem:[#allocation2] sm:$0xff]
    %v122 = vld [vmem:[%s3] sm:$0xff]
    %123 = vmatprep.subr.mxu0 0.0
    %124 = vmatpush1.xpose.msra.mxu0 %v122
    %125 = vmatprep.subr.mxu0 0.0
    %126 = vmatpush1.xpose.msra.mxu0 0.0
    %127 = vmatprep.subr.mxu0 0.0
    %128 = vmatpush1.xpose.msra.mxu0 0.0
    %129 = vmatprep.subr.mxu0 0.0
    %130 = vmatpush1.xpose.msra.mxu0 0.0
    %131 = vmatprep.subr.mxu0 0.0
    %132 = vmatpush1.xpose.msra.mxu0 0.0
    %133 = vmatprep.subr.mxu0 0.0
    %134 = vmatpush1.xpose.msra.mxu0 0.0
    %135 = vmatprep.subr.mxu0 0.0
    %136 = vmatpush1.xpose.msra.mxu0 0.0
    %137 = vmatprep.subr.mxu0 0.0
    %138 = vmatpush1.xpose.msra.mxu0 0.0
    %139 = vmatprep.subr.mxu0 0.0
    %140 = vmatpush1.xpose.msra.mxu0 0.0
    %141 = vmatprep.subr.mxu0 0.0
    %142 = vmatpush1.xpose.msra.mxu0 0.0
    %143 = vmatprep.subr.mxu0 0.0
    %144 = vmatpush1.xpose.msra.mxu0 0.0
    %145 = vmatprep.subr.mxu0 0.0
    %146 = vmatpush1.xpose.msra.mxu0 0.0
    %147 = vmatprep.subr.mxu0 0.0
    %148 = vmatpush1.xpose.msra.mxu0 0.0
    %149 = vmatprep.subr.mxu0 0.0
    %150 = vmatpush1.xpose.msra.mxu0 0.0
    %151 = vmatprep.subr.mxu0 0.0
    %152 = vmatpush1.xpose.msra.mxu0 0.0
    %153 = vmatprep.subr.mxu0 0.0
    %154 = vmatpush1.xpose.msra.mxu0 0.0
    %155 = vmatprep.subr.mxu0 0.0
    %156 = vmatpush1.xpose.msra.mxu0 0.0
    %157 = vmatprep.subr.mxu0 0.0
    %158 = vmatpush1.xpose.msra.mxu0 0.0
    %159 = vmatprep.subr.mxu0 0.0
    %160 = vmatpush1.xpose.msra.mxu0 0.0
    %161 = vmatprep.subr.mxu0 0.0
    %162 = vmatpush1.xpose.msra.mxu0 0.0
    %163 = vmatprep.subr.mxu0 0.0
    %164 = vmatpush1.xpose.msra.mxu0 0.0
    %165 = vmatprep.subr.mxu0 0.0
    %166 = vmatpush1.xpose.msra.mxu0 0.0
    %167 = vmatprep.subr.mxu0 0.0
    %168 = vmatpush1.xpose.msra.mxu0 0.0
    %169 = vmatprep.subr.mxu0 0.0
    %170 = vmatpush1.xpose.msra.mxu0 0.0
    %171 = vmatprep.subr.mxu0 0.0
    %172 = vmatpush1.xpose.msra.mxu0 0.0
    %173 = vmatprep.subr.mxu0 0.0
    %174 = vmatpush1.xpose.msra.mxu0 0.0
    %175 = vmatprep.subr.mxu0 0.0
    %176 = vmatpush1.xpose.msra.mxu0 0.0
    %177 = vmatprep.subr.mxu0 0.0
    %178 = vmatpush1.xpose.msra.mxu0 0.0
    %179 = vmatprep.subr.mxu0 0.0
    %180 = vmatpush1.xpose.msra.mxu0 0.0
    %181 = vmatprep.subr.mxu0 0.0
    %182 = vmatpush1.xpose.msra.mxu0 0.0
    %183 = vmatprep.subr.mxu0 0.0
    %184 = vmatpush1.xpose.msra.mxu0 0.0
    %185 = vmatprep.subr.mxu0 0.0
    %186 = vmatpush1.xpose.msra.mxu0 0.0
    %187 = vmatprep.mubr.f32.mxu0 0.0
    %188 = vmatmul.mubr.f32.gmra.mrb[0].mxu0 %v121
    %v189 = vpop.f32.mrb[0].mxu0
    %v190 = vadd.f32 0.0, %v189
    %v191 = vpop.f32.mrb[0].mxu0
    %192 = vdwg.mxu0
    %v193 = vld [vmem:[#allocation3] sm:$0xff]
    %v194 = vld [vmem:[%s4] sm:$0xff]
    %vm195 = vcmask 64512
    %v197 = vsel %vm195, %v190, 0
    %199 = vmatprep.subr.mxu0 0.0
    %200 = vmatpush1.msra.mxu0 %v194
    %201 = vmatprep.subr.mxu0 0.0
    %202 = vmatpush1.msra.mxu0 0.0
    %203 = vmatprep.subr.mxu0 0.0
    %204 = vmatpush1.msra.mxu0 0.0
    %205 = vmatprep.subr.mxu0 0.0
    %206 = vmatpush1.msra.mxu0 0.0
    %207 = vmatprep.subr.mxu0 0.0
    %208 = vmatpush1.msra.mxu0 0.0
    %209 = vmatprep.subr.mxu0 0.0
    %210 = vmatpush1.msra.mxu0 0.0
    %211 = vmatprep.subr.mxu0 0.0
    %212 = vmatpush1.msra.mxu0 0.0
    %213 = vmatprep.subr.mxu0 0.0
    %214 = vmatpush1.msra.mxu0 0.0
    %215 = vmatprep.subr.mxu0 0.0
    %216 = vmatpush1.msra.mxu0 0.0
    %217 = vmatprep.subr.mxu0 0.0
    %218 = vmatpush1.msra.mxu0 0.0
    %219 = vmatprep.subr.mxu0 0.0
    %220 = vmatpush1.msra.mxu0 0.0
    %221 = vmatprep.subr.mxu0 0.0
    %222 = vmatpush1.msra.mxu0 0.0
    %223 = vmatprep.subr.mxu0 0.0
    %224 = vmatpush1.msra.mxu0 0.0
    %225 = vmatprep.subr.mxu0 0.0
    %226 = vmatpush1.msra.mxu0 0.0
    %227 = vmatprep.subr.mxu0 0.0
    %228 = vmatpush1.msra.mxu0 0.0
    %229 = vmatprep.subr.mxu0 0.0
    %230 = vmatpush1.msra.mxu0 0.0
    %231 = vmatprep.subr.mxu0 0.0
    %232 = vmatpush1.msra.mxu0 0.0
    %233 = vmatprep.subr.mxu0 0.0
    %234 = vmatpush1.msra.mxu0 0.0
    %235 = vmatprep.subr.mxu0 0.0
    %236 = vmatpush1.msra.mxu0 0.0
    %237 = vmatprep.subr.mxu0 0.0
    %238 = vmatpush1.msra.mxu0 0.0
    %239 = vmatprep.subr.mxu0 0.0
    %240 = vmatpush1.msra.mxu0 0.0
    %241 = vmatprep.subr.mxu0 0.0
    %242 = vmatpush1.msra.mxu0 0.0
    %243 = vmatprep.subr.mxu0 0.0
    %244 = vmatpush1.msra.mxu0 0.0
    %245 = vmatprep.subr.mxu0 0.0
    %246 = vmatpush1.msra.mxu0 0.0
    %247 = vmatprep.subr.mxu0 0.0
    %248 = vmatpush1.msra.mxu0 0.0
    %249 = vmatprep.subr.mxu0 0.0
    %250 = vmatpush1.msra.mxu0 0.0
    %251 = vmatprep.subr.mxu0 0.0
    %252 = vmatpush1.msra.mxu0 0.0
    %253 = vmatprep.subr.mxu0 0.0
    %254 = vmatpush1.msra.mxu0 0.0
    %255 = vmatprep.subr.mxu0 0.0
    %256 = vmatpush1.msra.mxu0 0.0
    %257 = vmatprep.subr.mxu0 0.0
    %258 = vmatpush1.msra.mxu0 0.0
    %259 = vmatprep.subr.mxu0 0.0
    %260 = vmatpush1.msra.mxu0 0.0
    %261 = vmatprep.subr.mxu0 0.0
    %262 = vmatpush1.msra.mxu0 0.0
    %263 = vmatprep.mubr.f32.mxu0 0.0
    %264 = vmatmul.mubr.f32.gmra.mrb[0].mxu0 %v197
    %v265 = vpop.f32.mrb[0].mxu0
    %v266 = vadd.f32 0.0, %v265
    %v267 = vpop.f32.mrb[0].mxu0
    %268 = vdwg.mxu0
    %v269 = vadd.f32 %v193, %v266
    %270 = vst [vmem:[#allocation3] sm:$0xff] %v269
    // Predicated region
    $region26: #{attention_forward.3} parent=1 // pred_check
      _
    $region27: #{attention_forward.3} parent=1 // pred_check_branch
      %272 = sbr.rel (0) target = $region29
    $region28: #{attention_forward.3} parent=1 // pred_region
      %s274 = ssub.s32 128, 128
      %275 = vsyncadd [#allocation4], %s274
      %s277 = sshll.u32 [#allocation3], 4
      %s278 = int_to_ptr.vmem [resolvable:$true] %s277
      %280 = dma.vmem_to_hbm [thread:$0]  %s278, 128, %s5, [#allocation4]
    $region29: #{attention_forward.3} parent=1 // pred_fallthru
      _
    // Predicated region
    $region30: #{attention_forward.3} parent=1 // pred_check
      _
    $region31: #{attention_forward.3} parent=1 // pred_check_branch
      %282 = sbr.rel (0) target = $region33
    $region32: #{attention_forward.3} parent=1 // pred_region
      %283 = dma.done [#allocation4], 128
    $region33: #{attention_forward.3} parent=1 // pred_fallthru
      _
    %284 = vsyncpa [#allocation4], 1

</llo_original>
